<compile_context>
chip_gen: v5e
topology: v5e:2x2
jax: 0.10.0
libtpu: 0.0.40
codegen_flags: <defaults>
</compile_context>

<pallas_src>
import functools

import jax
import jax.numpy as jnp
from jax.experimental import pallas as pl
from jax.experimental.pallas import tpu as pltpu

O_PAD = 128     # lane-dense output width
SUBLANES = 8


def _round_up(x, m):
    return ((x + m - 1) // m) * m


# ----------------------------- Pallas kernel ---------------------------------
def fullmodel_kernel(trg_ref, hid_ref, wdec_ref, w1_ref, small_ref, out_ref, *, h1, o):
    # decode stub (opaque external module) fused in-kernel: output = tanh(trg @ W_dec)
    dec = jnp.tanh(
        jnp.dot(trg_ref[...], wdec_ref[...], preferred_element_type=jnp.float32)
    )  # [B_pad, H2]

    bw = small_ref[...]  # [2, O_PAD]: row 0 = [b1, b2, 0...], row 1 = [w2, 1.0, 0...]

    # output1 = cat([hid, output], dim=1);  outputs = liner1(output1)
    # Single-weight form: cat(hid, dec) @ W1 == hid @ W1[:H1] + dec @ W1[H1:]
    outputs = (
        jnp.dot(hid_ref[...], w1_ref[:h1, :], preferred_element_type=jnp.float32)
        + jnp.dot(dec, w1_ref[h1:, :], preferred_element_type=jnp.float32)
        + bw[0:1, :]
    )  # [B_pad, O_PAD]; lanes >= o carry only b1_pad (lane o == b2, rest zero)

    # TODO(synk): self.decoder.forward(outputs, token_lenth) is an opaque external module;
    # modeled as an identity pass-through producing `outpute` (lanes [0:o) of the slab).

    # y = liner2(outpute) + b2 ; outputs11 = sigmoid(y)
    # Lane reduction (XLU) + sigmoid (EUP): b2 rides in lane o (outputs[:, o] == b2 and
    # w2_pad[o] == 1), so the reduction already includes the bias.
    y = jnp.sum(outputs * bw[1:2, :], axis=-1, keepdims=True)  # [B_pad, 1]
    sig = jax.nn.sigmoid(y)

    # Single lane-dense store: lanes [0:o) = outpute, lane o = sigmoid, rest = 0.
    lane = jax.lax.broadcasted_iota(jnp.int32, outputs.shape, 1)
    out_ref[...] = jnp.where(lane == o, sig, outputs)


# ----------------------------- wrapper ---------------------------------------
@functools.partial(jax.jit, static_argnames=("num_layer", "output_size"))
def fullmodel_forward(features, node_order, adjacency_list, edge_order, treesizes,
                      trg, token_lenth, sen_len, params, *, num_layer, output_size):
    """Mirrors Fullmodel.forward; encoder stub in plain JAX, hot path fused in Pallas."""
    B, seq = trg.shape
    H2 = params["w_dec_stub"].shape[1]
    H1 = params["w1"].shape[0] - H2
    B_pad = _round_up(B, SUBLANES)

    # --- encoder stub (opaque external module): produces hidden [L, B, H1] -----------
    pooled = jnp.mean(features)
    L = num_layer + 1
    hidden = jnp.tanh(
        jnp.arange(L * B * H1, dtype=jnp.float32).reshape(L, B, H1) * 0.01 + pooled
    )
    # cell unused downstream

    # hid = hidden[self.num_layer, :, :]   (slice fuses into the padding copy under jit)
    hid = hidden[num_layer]  # [B, H1]

    # Pad batch to a sublane multiple so every vld/vst inside the kernel is unmasked.
    trg_p = jnp.pad(trg.astype(jnp.float32), ((0, B_pad - B), (0, 0)))   # [B_pad, seq]
    hid_p = jnp.pad(hid, ((0, B_pad - B), (0, 0)))                       # [B_pad, H1]

    operands = (trg_p, hid_p, params["w_dec_stub"], params["w1"], params["b1w2"])
    bytes_accessed = sum(int(a.size) * 4 for a in operands) + B_pad * O_PAD * 4
    cost = pl.CostEstimate(
        flops=2 * B_pad * (seq * H2 + (H1 + H2) * O_PAD),
        transcendentals=B_pad * (H2 + 1),
        bytes_accessed=bytes_accessed,
    )

    kernel = functools.partial(fullmodel_kernel, h1=H1, o=output_size)
    slab = pl.pallas_call(
        kernel,
        out_shape=jax.ShapeDtypeStruct((B_pad, O_PAD), jnp.float32),
        in_specs=[
            pl.BlockSpec(memory_space=pltpu.MemorySpace.VMEM),  # trg (padded)
            pl.BlockSpec(memory_space=pltpu.MemorySpace.VMEM),  # hid (padded)
            pl.BlockSpec(memory_space=pltpu.MemorySpace.VMEM),  # w_dec_stub
            pl.BlockSpec(memory_space=pltpu.MemorySpace.VMEM),  # w1 (lane-padded)
            pl.BlockSpec(memory_space=pltpu.MemorySpace.VMEM),  # packed [b1+b2; w2+1]
        ],
        out_specs=pl.BlockSpec(memory_space=pltpu.MemorySpace.VMEM),
        cost_estimate=cost,
    )(*operands)

    outpute = slab[:B, :output_size]                      # [B, O]
    outputs11 = slab[:B, output_size:output_size + 1]     # [B, 1]

    # TODO(synk): `aa` is the opaque decoder's auxiliary output (e.g. attention weights);
    # returned as a correctly-batched zero placeholder.
    aa = jnp.zeros((B, 1), dtype=jnp.float32)
    return outpute, outputs11, aa


# ----------------------------- setup / main -----------------------------------
def make_params(key, H1, H2, output_size, seq):
    """Builds already-padded / pre-packed parameters (no per-call packing)."""
    hidden_size = H1 + H2
    k1, k2, k3, k4, k5 = jax.random.split(key, 5)
    scale1 = 1.0 / jnp.sqrt(hidden_size)
    scale2 = 1.0 / jnp.sqrt(output_size)

    # liner1: nn.Linear(hidden_size, output_size) stored as [in, out], lane-padded to 128
    w1 = jax.random.uniform(k1, (hidden_size, output_size), jnp.float32, -scale1, scale1)
    b1 = jax.random.uniform(k2, (output_size,), jnp.float32, -scale1, scale1)
    # liner2: nn.Linear(output_size, 1)
    w2 = jax.random.uniform(k3, (output_size,), jnp.float32, -scale2, scale2)
    b2 = jax.random.uniform(k4, (1,), jnp.float32, -scale2, scale2)

    w1_pad = jnp.zeros((hidden_size, O_PAD), jnp.float32).at[:, :output_size].set(w1)
    # packed small operands: row 0 = [b1 ..., b2, 0...], row 1 = [w2 ..., 1.0, 0...]
    b1w2 = jnp.zeros((2, O_PAD), jnp.float32)
    b1w2 = b1w2.at[0, :output_size].set(b1).at[0, output_size].set(b2[0])
    b1w2 = b1w2.at[1, :output_size].set(w2).at[1, output_size].set(1.0)

    return {
        "w1": w1_pad,                                                   # [H1+H2, 128]
        "b1w2": b1w2,                                                   # [2, 128]
        # decode-stub projection (deterministic stand-in weight), tied to seq length
        "w_dec_stub": jax.random.normal(k5, (seq, H2), jnp.float32) * 0.1,
    }


if __name__ == "__main__":
    key = jax.random.PRNGKey(0)
    kf, kt, kp = jax.random.split(key, 3)

    B = 2            # batch
    H1 = 16          # encoder hidden per-layer feature size
    H2 = 16          # decode output feature size  (hidden_size = H1 + H2 = 32)
    output_size = 16
    num_layers = 2   # encoder layers; Fullmodel uses num_layer = num_layers - 1
    seq = 8
    n_nodes = 10

    params = make_params(kp, H1, H2, output_size, seq)

    features = jax.random.normal(kf, (n_nodes, H1), jnp.float32)
    node_order = jnp.arange(n_nodes, dtype=jnp.int32)
    adjacency_list = jnp.zeros((n_nodes - 1, 2), jnp.int32)
    edge_order = jnp.arange(n_nodes - 1, dtype=jnp.int32)
    treesizes = jnp.array([n_nodes // 2, n_nodes - n_nodes // 2], jnp.int32)
    trg = jax.random.normal(kt, (B, seq), jnp.float32)
    token_lenth = jnp.full((B,), seq, jnp.int32)
    sen_len = jnp.full((B,), seq, jnp.int32)

    outpute, outputs11, aa = fullmodel_forward(
        features, node_order, adjacency_list, edge_order, treesizes,
        trg, token_lenth, sen_len, params,
        num_layer=num_layers - 1, output_size=output_size)

    jax.block_until_ready((outpute, outputs11, aa))
    assert outpute.shape == (B, output_size)
    assert outputs11.shape == (B, 1)
    assert aa.shape == (B, 1)
    assert bool(jnp.all((outputs11 > 0.0) & (outputs11 < 1.0)))
    assert bool(jnp.all(jnp.isfinite(outpute)))
    print("KERNEL_OK")
</pallas_src>

<mosaic_0001>
module attributes {stable_mosaic.version = 11 : i64} {
  func.func @fullmodel_kernel(%arg0: memref<8x8xf32, #tpu.memory_space<vmem>>, %arg1: memref<8x16xf32, #tpu.memory_space<vmem>>, %arg2: memref<8x16xf32, #tpu.memory_space<vmem>>, %arg3: memref<32x128xf32, #tpu.memory_space<vmem>>, %arg4: memref<2x128xf32, #tpu.memory_space<vmem>>, %arg5: memref<8x128xf32, #tpu.memory_space<vmem>>) attributes {dimension_semantics = [], scalar_prefetch = 0 : i64, scratch_operands = 0 : i64, tpu.core_type = #tpu.core_type<tc>} {
    %c0 = arith.constant 0 : index
    %c0_0 = arith.constant 0 : index
    %0 = vector.load %arg0[%c0, %c0_0] : memref<8x8xf32, #tpu.memory_space<vmem>>, vector<8x8xf32>
    %c0_1 = arith.constant 0 : index
    %c0_2 = arith.constant 0 : index
    %1 = vector.load %arg2[%c0_1, %c0_2] : memref<8x16xf32, #tpu.memory_space<vmem>>, vector<8x16xf32>
    %cst = arith.constant dense<0.000000e+00> : vector<8x16xf32>
    %2 = tpu.matmul %0, %1, %cst {dimension_numbers = #tpu.dot_dimension_numbers<[1], [0], [0], [1], [0, 0, 1, 1], [], []>} : vector<8x8xf32>, vector<8x16xf32>, vector<8x16xf32> -> vector<8x16xf32>
    %3 = math.tanh %2 : vector<8x16xf32>
    %c0_3 = arith.constant 0 : index
    %c0_4 = arith.constant 0 : index
    %4 = vector.load %arg4[%c0_3, %c0_4] : memref<2x128xf32, #tpu.memory_space<vmem>>, vector<2x128xf32>
    %c0_5 = arith.constant 0 : index
    %c0_6 = arith.constant 0 : index
    %5 = vector.load %arg1[%c0_5, %c0_6] : memref<8x16xf32, #tpu.memory_space<vmem>>, vector<8x16xf32>
    %c0_7 = arith.constant 0 : index
    %c0_8 = arith.constant 0 : index
    %6 = vector.load %arg3[%c0_7, %c0_8] : memref<32x128xf32, #tpu.memory_space<vmem>>, vector<16x128xf32>
    %cst_9 = arith.constant dense<0.000000e+00> : vector<8x128xf32>
    %7 = tpu.matmul %5, %6, %cst_9 {dimension_numbers = #tpu.dot_dimension_numbers<[1], [0], [0], [1], [0, 0, 1, 1], [], []>} : vector<8x16xf32>, vector<16x128xf32>, vector<8x128xf32> -> vector<8x128xf32>
    %c16 = arith.constant 16 : index
    %c0_10 = arith.constant 0 : index
    %8 = vector.load %arg3[%c16, %c0_10] : memref<32x128xf32, #tpu.memory_space<vmem>>, vector<16x128xf32>
    %cst_11 = arith.constant dense<0.000000e+00> : vector<8x128xf32>
    %9 = tpu.matmul %3, %8, %cst_11 {dimension_numbers = #tpu.dot_dimension_numbers<[1], [0], [0], [1], [0, 0, 1, 1], [], []>} : vector<8x16xf32>, vector<16x128xf32>, vector<8x128xf32> -> vector<8x128xf32>
    %10 = arith.addf %7, %9 : vector<8x128xf32>
    %11 = vector.extract_strided_slice %4 {offsets = [0, 0], sizes = [1, 128], strides = [1, 1]} : vector<2x128xf32> to vector<1x128xf32>
    %12 = vector.broadcast %11 : vector<1x128xf32> to vector<8x128xf32>
    %13 = arith.addf %10, %12 : vector<8x128xf32>
    %14 = vector.extract_strided_slice %4 {offsets = [1, 0], sizes = [1, 128], strides = [1, 1]} : vector<2x128xf32> to vector<1x128xf32>
    %15 = vector.broadcast %14 : vector<1x128xf32> to vector<8x128xf32>
    %16 = arith.mulf %13, %15 : vector<8x128xf32>
    %cst_12 = arith.constant dense<0.000000e+00> : vector<8xf32>
    %17 = vector.multi_reduction <add>, %16, %cst_12 [1] : vector<8x128xf32> to vector<8xf32>
    %18 = vector.shape_cast %17 : vector<8xf32> to vector<8x1xf32>
    %19 = arith.negf %18 : vector<8x1xf32>
    %20 = math.exp %19 : vector<8x1xf32>
    %cst_13 = arith.constant 1.000000e+00 : f32
    %21 = vector.broadcast %cst_13 : f32 to vector<8x1xf32>
    %22 = arith.addf %21, %20 : vector<8x1xf32>
    %23 = arith.divf %21, %22 : vector<8x1xf32>
    %24 = tpu.iota {dimensions = array<i32: 1>} : vector<8x128xi32>
    %c16_i32 = arith.constant 16 : i32
    %25 = vector.broadcast %c16_i32 : i32 to vector<8x128xi32>
    %26 = arith.cmpi eq, %24, %25 : vector<8x128xi32>
    %27 = vector.shape_cast %23 : vector<8x1xf32> to vector<8x1xf32>
    %28 = vector.broadcast %27 : vector<8x1xf32> to vector<8x128xf32>
    %29 = arith.select %26, %28, %13 : vector<8x128xi1>, vector<8x128xf32>
    %c0_14 = arith.constant 0 : index
    %c0_15 = arith.constant 0 : index
    %30 = vector.load %arg5[%c0_14, %c0_15] : memref<8x128xf32, #tpu.memory_space<vmem>>, vector<8x128xf32>
    tpu.vector_store %arg5[%c0_14, %c0_15], %29 {strides = array<i32>} : memref<8x128xf32, #tpu.memory_space<vmem>>, vector<8x128xf32>,
    return
  }
}

</mosaic_0001>

<llo_original>
// kernel: fullmodel_forward.1
$region0: #{fullmodel_forward.1}
  #allocation0 [shape = 'u32[]', space=smem, size = 0x4, offset = 0x4, fixed_abs, tag = 'smem constant byte address 0x4 - core index']
  #allocation1 [shape = 'u32[72,128]{1,0:T(1,128)}', space=vmem, size = 0x9000, scoped, tag = 'internal scratch']
  %s0 = inlined_call_operand.vmem [shape: f32[8,8], index: 0, kind: input, shape index: {}]
  %s1 = inlined_call_operand.vmem [shape: f32[8,16], index: 1, kind: input, shape index: {}]
  %s2 = inlined_call_operand.vmem [shape: f32[8,16], index: 2, kind: input, shape index: {}]
  %s3 = inlined_call_operand.vmem [shape: f32[32,128], index: 3, kind: input, shape index: {}]
  %s4 = inlined_call_operand.vmem [shape: f32[2,128], index: 4, kind: input, shape index: {}]
  %s5 = inlined_call_operand.vmem [shape: f32[8,128], index: 5, kind: output, shape index: {}]
  %s6 = sld [smem:[#allocation0]]
  $region30: #{fullmodel_forward.1} parent=0
    _
  %s8 = ssub.s32 1, %s6
  %s9 = scalar_select 0, %s8, %s6
  // Predicated region
  $region2: #{fullmodel_forward.1} parent=0 // pred_check
    _
  $region3: #{fullmodel_forward.1} parent=0 // pred_check_branch
    %11 = sbr.rel (0) target = $region5
  $region4: #{fullmodel_forward.1} parent=0 // pred_region
    _
  $region5: #{fullmodel_forward.1} parent=0 // pred_fallthru
    _
  // Predicated region
  $region6: #{fullmodel_forward.1} parent=0 // pred_check
    _
  $region7: #{fullmodel_forward.1} parent=0 // pred_check_branch
    %13 = sbr.rel (0) target = $region9
  $region8: #{fullmodel_forward.1} parent=0 // pred_region
    _
  $region9: #{fullmodel_forward.1} parent=0 // pred_fallthru
    _
  // Predicated region
  $region10: #{fullmodel_forward.1} parent=0 // pred_check
    _
  $region11: #{fullmodel_forward.1} parent=0 // pred_check_branch
    %15 = sbr.rel (0) target = $region13
  $region12: #{fullmodel_forward.1} parent=0 // pred_region
    _
  $region13: #{fullmodel_forward.1} parent=0 // pred_fallthru
    _
  // Predicated region
  $region14: #{fullmodel_forward.1} parent=0 // pred_check
    _
  $region15: #{fullmodel_forward.1} parent=0 // pred_check_branch
    %17 = sbr.rel (0) target = $region17
  $region16: #{fullmodel_forward.1} parent=0 // pred_region
    _
  $region17: #{fullmodel_forward.1} parent=0 // pred_fallthru
    _
  // Predicated region
  $region18: #{fullmodel_forward.1} parent=0 // pred_check
    _
  $region19: #{fullmodel_forward.1} parent=0 // pred_check_branch
    %19 = sbr.rel (0) target = $region21
  $region20: #{fullmodel_forward.1} parent=0 // pred_region
    _
  $region21: #{fullmodel_forward.1} parent=0 // pred_fallthru
    _
  %v20 = vld [vmem:[%s0] sm:$0xff]
  %v21 = vld [vmem:[%s2] sm:$0xff]
  %vm22 = vcmask 64512
  %v24 = vsel %vm22, %v20, 0
  %26 = vmatpush.msra.mxu0 0.0
  %27 = vmatpush.msra.mxu0 0.0
  %28 = vmatpush.msra.mxu0 0.0
  %29 = vmatpush.msra.mxu0 0.0
  %30 = vmatpush.msra.mxu0 0.0
  %31 = vmatpush.msra.mxu0 0.0
  %32 = vmatpush.msra.mxu0 0.0
  %33 = vmatpush.msra.mxu0 0.0
  %34 = vmatpush.msra.mxu0 0.0
  %35 = vmatpush.msra.mxu0 0.0
  %36 = vmatpush.msra.mxu0 0.0
  %37 = vmatpush.msra.mxu0 0.0
  %38 = vmatpush.msra.mxu0 0.0
  %39 = vmatpush.msra.mxu0 0.0
  %40 = vmatpush.msra.mxu0 0.0
  %41 = vmatpush.msra.mxu0 %v21
  %42 = vmatmul.f32.gmra.mxu0 %v24
  %v43 = vpop.f32.mrf.mxu0
  %v44 = vadd.f32 0.0, %v43
  %45 = vdwg.mxu0
  %v46 = vtanh.pop %v44
  %v47 = vld [vmem:[%s4] sm:$0x3]
  %v48 = vld [vmem:[%s1] sm:$0xff]
  %v49 = vld [vmem:[%s3] sm:$0xff]
  %v50 = vld [vmem:[%s3 + $0x8] sm:$0xff]
  %v51 = vld [vmem:[%s3 + $0x10] sm:$0xff]
  %v52 = vld [vmem:[%s3 + $0x18] sm:$0xff]
  %vm53 = vcmask 130048
  %v55 = vsel %vm53, %v46, 0
  %57 = vmatpush.msra.mxu0 0.0
  %58 = vmatpush.msra.mxu0 0.0
  %59 = vmatpush.msra.mxu0 0.0
  %60 = vmatpush.msra.mxu0 0.0
  %61 = vmatpush.msra.mxu0 0.0
  %62 = vmatpush.msra.mxu0 0.0
  %63 = vmatpush.msra.mxu0 0.0
  %64 = vmatpush.msra.mxu0 0.0
  %65 = vmatpush.msra.mxu0 0.0
  %66 = vmatpush.msra.mxu0 0.0
  %67 = vmatpush.msra.mxu0 0.0
  %68 = vmatpush.msra.mxu0 0.0
  %69 = vmatpush.msra.mxu0 0.0
  %70 = vmatpush.msra.mxu0 0.0
  %71 = vmatpush.msra.mxu0 %v52
  %72 = vmatpush.msra.mxu0 %v51
  %73 = vmatmul.f32.gmra.mxu0 %v55
  %v74 = vpop.f32.mrf.mxu0
  %v75 = vadd.f32 0.0, %v74
  %76 = vdwg.mxu0
  %v78 = vsel %vm53, %v48, 0
  %80 = vmatpush.msra.mxu0 0.0
  %81 = vmatpush.msra.mxu0 0.0
  %82 = vmatpush.msra.mxu0 0.0
  %83 = vmatpush.msra.mxu0 0.0
  %84 = vmatpush.msra.mxu0 0.0
  %85 = vmatpush.msra.mxu0 0.0
  %86 = vmatpush.msra.mxu0 0.0
  %87 = vmatpush.msra.mxu0 0.0
  %88 = vmatpush.msra.mxu0 0.0
  %89 = vmatpush.msra.mxu0 0.0
  %90 = vmatpush.msra.mxu0 0.0
  %91 = vmatpush.msra.mxu0 0.0
  %92 = vmatpush.msra.mxu0 0.0
  %93 = vmatpush.msra.mxu0 0.0
  %94 = vmatpush.msra.mxu0 %v50
  %95 = vmatpush.msra.mxu0 %v49
  %96 = vmatmul.f32.gmra.mxu0 %v78
  %v97 = vpop.f32.mrf.mxu0
  %v98 = vadd.f32 %v75, %v97
  %99 = vdwg.mxu0
  %v100 = vperm.slane %v47, 0
  %v101 = vadd.f32 %v98, %v100
  %v102 = vperm.slane %v47, 1
  %v103 = vmul.f32 %v101, %v102
  %104 = vadd.xlane.f32.xlu0 %v103
  %v105 = vpop.xlane.xlu0 %104
  %v106 = vxor.u32 %v105, 2147483648
  %v107 = vmul.f32 %v106, 1.442695
  %v108 = vpow.pop %v107
  %v109 = vadd.f32 %v108, 1.0
  %v110 = vrcp.pop %v109
  %v111 = vmul.f32 %v109, %v110
  %v112 = vsub.f32 1.0, %v111
  %v113 = vmul.f32 %v110, %v112
  %v114 = vadd.f32 %v110, %v113
  %vm115 = vweird.f32 %v109
  %vm116 = vweird.f32 %v110
  %vm117 = vmor %vm115, %vm116
  %v118 = vsel %vm117, %v110, %v114
  %v119 = vand.u32 2147483647, %v109
  %vm120 = vcmp.eq.f32.partialorder %v119, 8.507059e+37
  %v121 = vand.u32 %v109, 2147483648
  %v122 = vor.u32 1.1754944e-38, %v121
  %v123 = vsel %vm120, %v122, %v118
  %v124 = vmul.f32 1.0, %v123
  %v125 = vlaneseq
  %v126 = vand.u32 %v125, 127
  %vm127 = vcmp.eq.s32.totalorder %v126, 16
  %v128 = vsel %vm127, %v124, %v101
  %129 = vst [vmem:[%s5] sm:$0xff] %v128
  // Predicated region
  $region22: #{fullmodel_forward.1} parent=0 // pred_check
    _
  $region23: #{fullmodel_forward.1} parent=0 // pred_check_branch
    %131 = sbr.rel (0) target = $region25
  $region24: #{fullmodel_forward.1} parent=0 // pred_region
    _
  $region25: #{fullmodel_forward.1} parent=0 // pred_fallthru
    _
  // Predicated region
  $region26: #{fullmodel_forward.1} parent=0 // pred_check
    _
  $region27: #{fullmodel_forward.1} parent=0 // pred_check_branch
    %133 = sbr.rel (0) target = $region29
  $region28: #{fullmodel_forward.1} parent=0 // pred_region
    _
  $region29: #{fullmodel_forward.1} parent=0 // pred_fallthru
    _

</llo_original>
